<compile_context>
chip_gen: v5e
topology: v5e:2x2
jax: 0.10.0
libtpu: 0.0.40
codegen_flags: <defaults>
</compile_context>

<pallas_src>
import functools

import jax
import jax.numpy as jnp
from jax.experimental import pallas as pl
from jax.experimental.pallas import tpu as pltpu


def attflat_kernel(x_ref, m_ref, wm_ref, bm_ref, wl_ref, bl_ref, o_ref):
    # x_ref : (Bt, S, H) batch tile of sequences
    # m_ref : (Bt, S, 1) mask (1 = keep, 0 = pad)
    # wm_ref: (H, H)     MLP weight (in, out)
    # bm_ref: (1, H)     MLP bias
    # wl_ref: (H, O)     output linear weight (in, out)
    # bl_ref: (1, O)     output linear bias
    # o_ref : (Bt, O)    pooled + projected outputs for this batch tile
    Bt, S, H = x_ref.shape

    # Flatten (Bt, S, H) -> (Bt*S, H): one tall MXU matmul, full vregs.
    x2 = x_ref[...].reshape(Bt * S, H)

    # MLP: linear + ReLU -> (Bt*S, H)
    att = jnp.dot(x2, wm_ref[...], preferred_element_type=jnp.float32) + bm_ref[...]
    att = jnp.maximum(att, 0.0)

    # masked_fill(mask == 0, -1e9). Since att is finite and >= 0, the mul-add
    # form is exactly where(m == 0, -1e9, att) without a compare+select.
    m = m_ref[...].reshape(Bt * S, 1)
    att = att * m + (m - 1.0) * 1000000000.0

    # Softmax over the hidden (lane) dimension.
    att = att - jnp.max(att, axis=-1, keepdims=True)
    e = jnp.exp(att)
    att = e * pl.reciprocal(jnp.sum(e, axis=-1, keepdims=True), approx=True)

    # Weighted sum over the sequence dimension -> (Bt, H)
    pooled = jnp.sum((att * x2).reshape(Bt, S, H), axis=1)

    # Final linear projection -> (Bt, O)
    o_ref[...] = (
        jnp.dot(pooled, wl_ref[...], preferred_element_type=jnp.float32) + bl_ref[...]
    )


def _pick_block_b(B, S, H, O):
    """Batch-tile size: multiple of 8 (dense output sublanes) dividing B,
    targeting >= 256 matmul rows per step, keeping >= 2 grid steps when
    possible (v7x has 2 TensorCores), and a conservative VMEM footprint."""
    if B < 8:
        return B
    vmem_budget = 24 * 2**20  # conservative against v7x's 64 MiB VMEM
    weight_bytes = 2 * 4 * (H * H + H + H * O + O)
    cap = max(8, B // 2)  # keep at least 2 grid steps when B >= 16
    best = None
    cand = 8
    while cand <= cap:
        if B % cand == 0:
            act_bytes = 2 * 4 * cand * (S * H + S + O) + 3 * 4 * cand * S * H
            if best is not None and weight_bytes + act_bytes > vmem_budget:
                break
            best = cand
            if cand * S >= 256:
                break
        cand += 8
    # Fall back to the full batch dim (always a legal block) if no multiple of
    # 8 divides B.
    return best if best is not None else B


def _vmem_limit_bytes(Bt, S, H, O):
    act = 2 * 4 * Bt * (S * H + S + O)      # double-buffered x / mask / out tiles
    wts = 2 * 4 * (H * H + H + H * O + O)   # grid-invariant weights
    tmp = 3 * 4 * Bt * S * H                # att / exp transients
    est = 2 * (act + wts + tmp)             # 2x headroom for compiler scratch
    # Stay below v7x's 64 MiB physical VMEM; never below the 32 MiB default.
    return int(min(56 * 2**20, max(32 * 2**20, est)))


@functools.partial(jax.jit, static_argnames=("block_b",))
def attflat(x, mask, wm, bm, wl, bl, *, block_b=None):
    B, S, H = x.shape
    O = wl.shape[1]
    Bt = block_b if block_b is not None else _pick_block_b(B, S, H, O)
    assert B % Bt == 0, (B, Bt)

    mask3 = mask.reshape(B, S, 1).astype(jnp.float32)
    bm2 = bm.reshape(1, H)
    bl2 = bl.reshape(1, O)

    return pl.pallas_call(
        attflat_kernel,
        out_shape=jax.ShapeDtypeStruct((B, O), jnp.float32),
        grid=(B // Bt,),
        in_specs=[
            pl.BlockSpec((Bt, S, H), lambda b: (b, 0, 0)),   # x     (batch tile)
            pl.BlockSpec((Bt, S, 1), lambda b: (b, 0, 0)),   # mask  (batch tile)
            pl.BlockSpec((H, H), lambda b: (0, 0)),          # Wm    (grid-invariant)
            pl.BlockSpec((1, H), lambda b: (0, 0)),          # bm    (grid-invariant)
            pl.BlockSpec((H, O), lambda b: (0, 0)),          # Wl    (grid-invariant)
            pl.BlockSpec((1, O), lambda b: (0, 0)),          # bl    (grid-invariant)
        ],
        out_specs=pl.BlockSpec((Bt, O), lambda b: (b, 0)),   # dense (Bt, O) tile
        compiler_params=pltpu.CompilerParams(
            dimension_semantics=("parallel",),
            vmem_limit_bytes=_vmem_limit_bytes(Bt, S, H, O),
        ),
    )(x, mask3, wm, bm2, wl, bl2)


def attflat_reference(x, mask, wm, bm, wl, bl):
    """Pure-JAX reference mirroring the PyTorch forward exactly."""
    att = jnp.maximum(jnp.einsum("bsh,ho->bso", x, wm) + bm, 0.0)
    att = jnp.where((mask == 0)[:, :, None], -1000000000.0, att)
    att = jax.nn.softmax(att, axis=-1)
    pooled = jnp.sum(att * x, axis=1)
    return pooled @ wl + bl


if __name__ == "__main__":
    B, S, H, O = 16, 8, 128, 256  # batch, seq, in_size (hidden), out_size

    key = jax.random.PRNGKey(0)
    kx, klen, kwm, kbm, kwl, kbl = jax.random.split(key, 6)

    x = jax.random.normal(kx, (B, S, H), dtype=jnp.float32)

    # mask: 1 = valid token, 0 = padding (variable lengths per sequence)
    lengths = jax.random.randint(klen, (B,), 1, S + 1)
    mask = (jnp.arange(S)[None, :] < lengths[:, None]).astype(jnp.float32)

    # deterministic "PyTorch-like" init: U(-1/sqrt(fan_in), 1/sqrt(fan_in)),
    # stored as (in, out) so the kernel computes x @ W + b.
    lim = 1.0 / (H ** 0.5)
    wm = jax.random.uniform(kwm, (H, H), jnp.float32, -lim, lim)
    bm = jax.random.uniform(kbm, (H,), jnp.float32, -lim, lim)
    wl = jax.random.uniform(kwl, (H, O), jnp.float32, -lim, lim)
    bl = jax.random.uniform(kbl, (O,), jnp.float32, -lim, lim)

    out = jax.block_until_ready(attflat(x, mask, wm, bm, wl, bl))
    ref = attflat_reference(x, mask, wm, bm, wl, bl)

    assert out.shape == (B, O), out.shape
    # approx=True reciprocal in the softmax -> slightly looser tolerance.
    assert jnp.allclose(out, ref, rtol=2e-3, atol=2e-3), (
        float(jnp.max(jnp.abs(out - ref)))
    )

    print("KERNEL_OK")
</pallas_src>

<mosaic_0001>
module attributes {stable_mosaic.version = 11 : i64} {
  func.func @attflat_kernel(%arg0: i32, %arg1: memref<8x8x128xf32, #tpu.memory_space<vmem>>, %arg2: memref<8x8x1xf32, #tpu.memory_space<vmem>>, %arg3: memref<128x128xf32, #tpu.memory_space<vmem>>, %arg4: memref<1x128xf32, #tpu.memory_space<vmem>>, %arg5: memref<128x256xf32, #tpu.memory_space<vmem>>, %arg6: memref<1x256xf32, #tpu.memory_space<vmem>>, %arg7: memref<8x256xf32, #tpu.memory_space<vmem>>) attributes {dimension_semantics = [#tpu.dimension_semantics<parallel>], iteration_bounds = array<i64: 2>, scalar_prefetch = 0 : i64, scratch_operands = 0 : i64, tpu.core_type = #tpu.core_type<tc>, window_params = [{transform_indices = @transform_0, window_bounds = array<i64: 8, 8, 128>}, {transform_indices = @transform_1, window_bounds = array<i64: 8, 8, 1>}, {pipeline_mode = #tpu.pipeline_mode<synchronous>, transform_indices = @transform_2, window_bounds = array<i64: 128, 128>}, {pipeline_mode = #tpu.pipeline_mode<synchronous>, transform_indices = @transform_3, window_bounds = array<i64: 1, 128>}, {pipeline_mode = #tpu.pipeline_mode<synchronous>, transform_indices = @transform_4, window_bounds = array<i64: 128, 256>}, {pipeline_mode = #tpu.pipeline_mode<synchronous>, transform_indices = @transform_5, window_bounds = array<i64: 1, 256>}, {transform_indices = @transform_6, window_bounds = array<i64: 8, 256>}]} {
    %c0 = arith.constant 0 : index
    %c0_0 = arith.constant 0 : index
    %c0_1 = arith.constant 0 : index
    %0 = vector.load %arg1[%c0, %c0_0, %c0_1] : memref<8x8x128xf32, #tpu.memory_space<vmem>>, vector<8x8x128xf32>
    %1 = vector.shape_cast %0 : vector<8x8x128xf32> to vector<64x128xf32>
    %c0_2 = arith.constant 0 : index
    %c0_3 = arith.constant 0 : index
    %2 = vector.load %arg3[%c0_2, %c0_3] : memref<128x128xf32, #tpu.memory_space<vmem>>, vector<128x128xf32>
    %cst = arith.constant dense<0.000000e+00> : vector<64x128xf32>
    %3 = tpu.matmul %1, %2, %cst {dimension_numbers = #tpu.dot_dimension_numbers<[1], [0], [0], [1], [0, 0, 1, 1], [], []>} : vector<64x128xf32>, vector<128x128xf32>, vector<64x128xf32> -> vector<64x128xf32>
    %c0_4 = arith.constant 0 : index
    %c0_5 = arith.constant 0 : index
    %4 = vector.load %arg4[%c0_4, %c0_5] : memref<1x128xf32, #tpu.memory_space<vmem>>, vector<1x128xf32>
    %5 = vector.broadcast %4 : vector<1x128xf32> to vector<64x128xf32>
    %6 = arith.addf %3, %5 : vector<64x128xf32>
    %cst_6 = arith.constant 0.000000e+00 : f32
    %7 = vector.broadcast %cst_6 : f32 to vector<64x128xf32>
    %8 = arith.maximumf %6, %7 : vector<64x128xf32>
    %c0_7 = arith.constant 0 : index
    %c0_8 = arith.constant 0 : index
    %c0_9 = arith.constant 0 : index
    %9 = vector.load %arg2[%c0_7, %c0_8, %c0_9] : memref<8x8x1xf32, #tpu.memory_space<vmem>>, vector<8x8x1xf32>
    %10 = vector.shape_cast %9 : vector<8x8x1xf32> to vector<64x1xf32>
    %11 = vector.broadcast %10 : vector<64x1xf32> to vector<64x128xf32>
    %12 = arith.mulf %8, %11 : vector<64x128xf32>
    %cst_10 = arith.constant 1.000000e+00 : f32
    %13 = vector.broadcast %cst_10 : f32 to vector<64x1xf32>
    %14 = arith.subf %10, %13 : vector<64x1xf32>
    %cst_11 = arith.constant 1.000000e+09 : f32
    %15 = vector.broadcast %cst_11 : f32 to vector<64x1xf32>
    %16 = arith.mulf %14, %15 : vector<64x1xf32>
    %17 = vector.broadcast %16 : vector<64x1xf32> to vector<64x128xf32>
    %18 = arith.addf %12, %17 : vector<64x128xf32>
    %cst_12 = arith.constant dense<0xFF800000> : vector<64xf32>
    %19 = vector.multi_reduction <maximumf>, %18, %cst_12 [1] : vector<64x128xf32> to vector<64xf32>
    %20 = vector.shape_cast %19 : vector<64xf32> to vector<64x1xf32>
    %21 = vector.broadcast %20 : vector<64x1xf32> to vector<64x128xf32>
    %22 = arith.subf %18, %21 : vector<64x128xf32>
    %23 = math.exp %22 : vector<64x128xf32>
    %cst_13 = arith.constant dense<0.000000e+00> : vector<64xf32>
    %24 = vector.multi_reduction <add>, %23, %cst_13 [1] : vector<64x128xf32> to vector<64xf32>
    %25 = vector.shape_cast %24 : vector<64xf32> to vector<64x1xf32>
    %26 = tpu.reciprocal %25 {approx = true} : vector<64x1xf32> -> vector<64x1xf32>
    %27 = vector.broadcast %26 : vector<64x1xf32> to vector<64x128xf32>
    %28 = arith.mulf %23, %27 : vector<64x128xf32>
    %29 = arith.mulf %28, %1 : vector<64x128xf32>
    %30 = vector.shape_cast %29 : vector<64x128xf32> to vector<8x8x128xf32>
    %cst_14 = arith.constant dense<0.000000e+00> : vector<8x128xf32>
    %31 = vector.multi_reduction <add>, %30, %cst_14 [1] : vector<8x8x128xf32> to vector<8x128xf32>
    %c0_15 = arith.constant 0 : index
    %c0_16 = arith.constant 0 : index
    %32 = vector.load %arg5[%c0_15, %c0_16] : memref<128x256xf32, #tpu.memory_space<vmem>>, vector<128x256xf32>
    %cst_17 = arith.constant dense<0.000000e+00> : vector<8x256xf32>
    %33 = tpu.matmul %31, %32, %cst_17 {dimension_numbers = #tpu.dot_dimension_numbers<[1], [0], [0], [1], [0, 0, 1, 1], [], []>} : vector<8x128xf32>, vector<128x256xf32>, vector<8x256xf32> -> vector<8x256xf32>
    %c0_18 = arith.constant 0 : index
    %c0_19 = arith.constant 0 : index
    %34 = vector.load %arg6[%c0_18, %c0_19] : memref<1x256xf32, #tpu.memory_space<vmem>>, vector<1x256xf32>
    %35 = vector.broadcast %34 : vector<1x256xf32> to vector<8x256xf32>
    %36 = arith.addf %33, %35 : vector<8x256xf32>
    %c0_20 = arith.constant 0 : index
    %c0_21 = arith.constant 0 : index
    %37 = vector.load %arg7[%c0_20, %c0_21] : memref<8x256xf32, #tpu.memory_space<vmem>>, vector<8x256xf32>
    tpu.vector_store %arg7[%c0_20, %c0_21], %36 {strides = array<i32>} : memref<8x256xf32, #tpu.memory_space<vmem>>, vector<8x256xf32>,
    return
  }
  func.func @transform_0(%arg0: i32) -> (i32, i32, i32) {
    %c0_i32 = arith.constant 0 : i32
    %c0_i32_0 = arith.constant 0 : i32
    %c0_i32_1 = arith.constant 0 : i32
    return %arg0, %c0_i32, %c0_i32_0 : i32, i32, i32
  }
  func.func @transform_1(%arg0: i32) -> (i32, i32, i32) {
    %c0_i32 = arith.constant 0 : i32
    %c0_i32_0 = arith.constant 0 : i32
    %c0_i32_1 = arith.constant 0 : i32
    return %arg0, %c0_i32, %c0_i32_0 : i32, i32, i32
  }
  func.func @transform_2(%arg0: i32) -> (i32, i32) {
    %c0_i32 = arith.constant 0 : i32
    %c0_i32_0 = arith.constant 0 : i32
    %c0_i32_1 = arith.constant 0 : i32
    return %c0_i32, %c0_i32_0 : i32, i32
  }
  func.func @transform_3(%arg0: i32) -> (i32, i32) {
    %c0_i32 = arith.constant 0 : i32
    %c0_i32_0 = arith.constant 0 : i32
    %c0_i32_1 = arith.constant 0 : i32
    return %c0_i32, %c0_i32_0 : i32, i32
  }
  func.func @transform_4(%arg0: i32) -> (i32, i32) {
    %c0_i32 = arith.constant 0 : i32
    %c0_i32_0 = arith.constant 0 : i32
    %c0_i32_1 = arith.constant 0 : i32
    return %c0_i32, %c0_i32_0 : i32, i32
  }
  func.func @transform_5(%arg0: i32) -> (i32, i32) {
    %c0_i32 = arith.constant 0 : i32
    %c0_i32_0 = arith.constant 0 : i32
    %c0_i32_1 = arith.constant 0 : i32
    return %c0_i32, %c0_i32_0 : i32, i32
  }
  func.func @transform_6(%arg0: i32) -> (i32, i32) {
    %c0_i32 = arith.constant 0 : i32
    %c0_i32_0 = arith.constant 0 : i32
    return %arg0, %c0_i32 : i32, i32
  }
}

</mosaic_0001>

<llo_original>
// kernel: attflat.1
$region0: #{attflat.1}
  #allocation0 [shape = 'u32[]', space=smem, size = 0x4, offset = 0x4, fixed_abs, tag = 'smem constant byte address 0x4 - core index']
  #allocation1 [shape = 'u32[72,128]{1,0:T(1,128)}', space=vmem, size = 0x9000, scoped, tag = 'internal scratch']
  %s0 = inlined_call_operand.vmem [shape: f32[16,8,128], index: 0, kind: input, shape index: {}]
  %s1 = inlined_call_operand.vmem [shape: f32[16,8,1], index: 1, kind: input, shape index: {}]
  %s2 = inlined_call_operand.hbm [shape: f32[128,128], index: 2, kind: input, shape index: {}]
  %s3 = inlined_call_operand.vmem [shape: f32[1,128], index: 3, kind: input, shape index: {}]
  %s4 = inlined_call_operand.hbm [shape: f32[128,256], index: 4, kind: input, shape index: {}]
  %s5 = inlined_call_operand.vmem [shape: f32[1,256], index: 5, kind: input, shape index: {}]
  %s6 = inlined_call_operand.hbm [shape: f32[16,256], index: 6, kind: output, shape index: {}]
  %s7 = sld [smem:[#allocation0]]
  $region65: #{attflat.1} parent=0
    _
  %s9 = ssub.s32 1, %s7
  %s10 = scalar_select 0, %s9, %s7
  $region1: #{attflat.1} parent=0
    #allocation2 [shape = 'u8[65536]{0}', space=vmem, size = 0x10000, scoped, tag = 'input window, operand 2, single buffered']
    #allocation3 [shape = 's32[2]{0}', space=sflag, size = 0x8, scoped, tag = 'scoped memory for attflat.1']
    #allocation4 [shape = 's32[2]{0}', space=sflag, size = 0x8, scoped, tag = 'scoped memory for attflat.1']
    #allocation5 [shape = 'u8[131072]{0}', space=vmem, size = 0x20000, scoped, tag = 'input window, operand 4, single buffered']
    #allocation6 [shape = 's32[1]{0}', space=sflag, size = 0x4, scoped, tag = 'scoped memory for attflat.1']
    #allocation7 [shape = 'u8[16384]{0}', space=vmem, size = 0x4000, scoped, tag = 'output window, operand 0']
    %11 = vsyncpa [#allocation3], 0
    %12 = vsyncpa [#allocation6], 0
    %13 = vsyncpa [#allocation4], 0
    %s14 = scalar_lea.sflag [#allocation4], 1
    %15 = vsyncpa %s14, 0
    loop: start=0, step=1, limit=4
    $region2: #{attflat.1} parent=1 // loop_pre_header
      _
    $region3: #{attflat.1} parent=1 // loop_header
      %s17 = sphi 0, %s21
      %p18 = scmp.ge.s32.totalorder %s17, 4
      %s27 = sphi 0, %s29
      %s30 = sphi 0, %s27
      %s31 = sphi 0, %s30
      %s47 = sphi 0, %s31
      %s53 = sphi 0, %s55
      %s56 = sphi 0, %s53
      %s57 = sphi 0, %s56
      %s73 = sphi 0, %s57
      %s77 = sphi 0, %s77
      %s79 = sphi 0, %s77
      %s80 = sphi 0, %s79
      %s94 = sphi 0, %s80
      %s98 = sphi 0, %s98
      %s100 = sphi 0, %s98
      %s101 = sphi 0, %s100
      %s115 = sphi 0, %s101
      %s119 = sphi 0, %s119
      %s121 = sphi 0, %s119
      %s122 = sphi 0, %s121
      %s136 = sphi 0, %s122
      %s140 = sphi 0, %s140
      %s142 = sphi 0, %s140
      %s143 = sphi 0, %s142
      %s157 = sphi 0, %s143
      %s163 = sphi 0, %s165
      %s166 = sphi 0, %s163
      %s167 = sphi 0, %s166
      %s183 = sphi 0, %s167
    $region4: #{attflat.1} parent=1 // loop_header_branch
      %20 = sbr.rel (%p18) target = $region8
    $region5: #{attflat.1} parent=1 // loop_body
      %s22 = ssub.s32 %s17, 1
      %s23 = ssub.s32 %s17, 2
      %s24 = sadd.s32 %s17, 1
      %s25 = ssub.s32 %s17, %s24
      %p26 = scmp.eq.s32.totalorder %s25, 0
      %s28 = sadd.s32 %s27, 1
      %s29 = scalar_select %p26, %s27, %s28
      %p32 = pneg %p26
      %p33 = scmp.eq.s32.totalorder %s17, 1
      %p34 = por %p32, %p33
      %p35 = scmp.ne.s32.totalorder %s27, %s30
      %p36 = scmp.eq.s32.totalorder %s17, 0
      %p37 = por %p35, %p36
      %p38 = scmp.ne.s32.totalorder %s27, %s30
      %p39 = scmp.eq.s32.totalorder %s22, 1
      %p40 = por %p38, %p39
      %p41 = scmp.ne.s32.totalorder %s30, %s31
      %p42 = scmp.eq.s32.totalorder %s22, 0
      %p43 = por %p41, %p42
      %p44 = scmp.ne.s32.totalorder %s30, %s31
      %p45 = scmp.eq.s32.totalorder %s23, 1
      %p46 = por %p44, %p45
      %p48 = scmp.ne.s32.totalorder %s31, %s47
      %p49 = scmp.eq.s32.totalorder %s23, 0
      %p50 = por %p48, %p49
      %s51 = ssub.s32 %s17, %s24
      %p52 = scmp.eq.s32.totalorder %s51, 0
      %s54 = sadd.s32 %s53, 1
      %s55 = scalar_select %p52, %s53, %s54
      %p58 = pneg %p52
      %p59 = scmp.eq.s32.totalorder %s17, 1
      %p60 = por %p58, %p59
      %p61 = scmp.ne.s32.totalorder %s53, %s56
      %p62 = scmp.eq.s32.totalorder %s17, 0
      %p63 = por %p61, %p62
      %p64 = scmp.ne.s32.totalorder %s53, %s56
      %p65 = scmp.eq.s32.totalorder %s22, 1
      %p66 = por %p64, %p65
      %p67 = scmp.ne.s32.totalorder %s56, %s57
      %p68 = scmp.eq.s32.totalorder %s22, 0
      %p69 = por %p67, %p68
      %p70 = scmp.ne.s32.totalorder %s56, %s57
      %p71 = scmp.eq.s32.totalorder %s23, 1
      %p72 = por %p70, %p71
      %p74 = scmp.ne.s32.totalorder %s57, %s73
      %p75 = scmp.eq.s32.totalorder %s23, 0
      %p76 = por %p74, %p75
      %s78 = sadd.s32 %s77, 1
      %p81 = scmp.eq.s32.totalorder %s17, 1
      %p82 = scmp.ne.s32.totalorder %s77, %s79
      %p83 = scmp.eq.s32.totalorder %s17, 0
      %p84 = por %p82, %p83
      %p85 = scmp.ne.s32.totalorder %s77, %s79
      %p86 = scmp.eq.s32.totalorder %s22, 1
      %p87 = por %p85, %p86
      %p88 = scmp.ne.s32.totalorder %s79, %s80
      %p89 = scmp.eq.s32.totalorder %s22, 0
      %p90 = por %p88, %p89
      %p91 = scmp.ne.s32.totalorder %s79, %s80
      %p92 = scmp.eq.s32.totalorder %s23, 1
      %p93 = por %p91, %p92
      %p95 = scmp.ne.s32.totalorder %s80, %s94
      %p96 = scmp.eq.s32.totalorder %s23, 0
      %p97 = por %p95, %p96
      %s99 = sadd.s32 %s98, 1
      %p102 = scmp.eq.s32.totalorder %s17, 1
      %p103 = scmp.ne.s32.totalorder %s98, %s100
      %p104 = scmp.eq.s32.totalorder %s17, 0
      %p105 = por %p103, %p104
      %p106 = scmp.ne.s32.totalorder %s98, %s100
      %p107 = scmp.eq.s32.totalorder %s22, 1
      %p108 = por %p106, %p107
      %p109 = scmp.ne.s32.totalorder %s100, %s101
      %p110 = scmp.eq.s32.totalorder %s22, 0
      %p111 = por %p109, %p110
      %p112 = scmp.ne.s32.totalorder %s100, %s101
      %p113 = scmp.eq.s32.totalorder %s23, 1
      %p114 = por %p112, %p113
      %p116 = scmp.ne.s32.totalorder %s101, %s115
      %p117 = scmp.eq.s32.totalorder %s23, 0
      %p118 = por %p116, %p117
      %s120 = sadd.s32 %s119, 1
      %p123 = scmp.eq.s32.totalorder %s17, 1
      %p124 = scmp.ne.s32.totalorder %s119, %s121
      %p125 = scmp.eq.s32.totalorder %s17, 0
      %p126 = por %p124, %p125
      %p127 = scmp.ne.s32.totalorder %s119, %s121
      %p128 = scmp.eq.s32.totalorder %s22, 1
      %p129 = por %p127, %p128
      %p130 = scmp.ne.s32.totalorder %s121, %s122
      %p131 = scmp.eq.s32.totalorder %s22, 0
      %p132 = por %p130, %p131
      %p133 = scmp.ne.s32.totalorder %s121, %s122
      %p134 = scmp.eq.s32.totalorder %s23, 1
      %p135 = por %p133, %p134
      %p137 = scmp.ne.s32.totalorder %s122, %s136
      %p138 = scmp.eq.s32.totalorder %s23, 0
      %p139 = por %p137, %p138
      %s141 = sadd.s32 %s140, 1
      %p144 = scmp.eq.s32.totalorder %s17, 1
      %p145 = scmp.ne.s32.totalorder %s140, %s142
      %p146 = scmp.eq.s32.totalorder %s17, 0
      %p147 = por %p145, %p146
      %p148 = scmp.ne.s32.totalorder %s140, %s142
      %p149 = scmp.eq.s32.totalorder %s22, 1
      %p150 = por %p148, %p149
      %p151 = scmp.ne.s32.totalorder %s142, %s143
      %p152 = scmp.eq.s32.totalorder %s22, 0
      %p153 = por %p151, %p152
      %p154 = scmp.ne.s32.totalorder %s142, %s143
      %p155 = scmp.eq.s32.totalorder %s23, 1
      %p156 = por %p154, %p155
      %p158 = scmp.ne.s32.totalorder %s143, %s157
      %p159 = scmp.eq.s32.totalorder %s23, 0
      %p160 = por %p158, %p159
      %s161 = ssub.s32 %s17, %s24
      %p162 = scmp.eq.s32.totalorder %s161, 0
      %s164 = sadd.s32 %s163, 1
      %s165 = scalar_select %p162, %s163, %s164
      %p168 = pneg %p162
      %p169 = scmp.eq.s32.totalorder %s17, 1
      %p170 = por %p168, %p169
      %p171 = scmp.ne.s32.totalorder %s163, %s166
      %p172 = scmp.eq.s32.totalorder %s17, 0
      %p173 = por %p171, %p172
      %p174 = scmp.ne.s32.totalorder %s163, %s166
      %p175 = scmp.eq.s32.totalorder %s22, 1
      %p176 = por %p174, %p175
      %p177 = scmp.ne.s32.totalorder %s166, %s167
      %p178 = scmp.eq.s32.totalorder %s22, 0
      %p179 = por %p177, %p178
      %p180 = scmp.ne.s32.totalorder %s166, %s167
      %p181 = scmp.eq.s32.totalorder %s23, 1
      %p182 = por %p180, %p181
      %p184 = scmp.ne.s32.totalorder %s167, %s183
      %p185 = scmp.eq.s32.totalorder %s23, 0
      %p186 = por %p184, %p185
      %p187 = scmp.le.s32.totalorder 1, %s17
      %p188 = scmp.lt.s32.totalorder %s17, 3
      %p189 = pnand %p187, %p188
      %p190 = pneg %p189
      // Predicated region
      $region9: #{attflat.1} parent=5 // pred_check
        _
      $region10: #{attflat.1} parent=5 // pred_check_branch
        %192 = sbr.rel (%p189) target = $region12
      $region11: #{attflat.1} parent=5 // pred_region
        %s193 = ssub.s32 %s17, 1
        // Predicated region
        $region13: #{attflat.1} parent=11 // pred_check
          %p194 = pneg %p90
        $region14: #{attflat.1} parent=11 // pred_check_branch
          %196 = sbr.rel (%p194) target = $region16
        $region15: #{attflat.1} parent=11 // pred_region
          %198 = vsyncadd [#allocation3], 0
          %s199 = sshll.u32 %s2, 4
          %s200 = int_to_ptr.hbm [resolvable:$true] %s199
          %s201 = sshll.u32 [#allocation2], 4
          %s202 = int_to_ptr.vmem [resolvable:$true] %s201
          %207 = dma.hbm_to_vmem [thread:$0]  %s200, 2048, %s202, [#allocation3], 128, 128, 8
        $region16: #{attflat.1} parent=11 // pred_fallthru
          _
        // Predicated region
        $region17: #{attflat.1} parent=11 // pred_check
          %p208 = pneg %p111
        $region18: #{attflat.1} parent=11 // pred_check_branch
          %210 = sbr.rel (%p208) target = $region20
        $region19: #{attflat.1} parent=11 // pred_region
          _
        $region20: #{attflat.1} parent=11 // pred_fallthru
          _
        // Predicated region
        $region21: #{attflat.1} parent=11 // pred_check
          %p211 = pneg %p132
        $region22: #{attflat.1} parent=11 // pred_check_branch
          %213 = sbr.rel (%p211) target = $region24
        $region23: #{attflat.1} parent=11 // pred_region
          %215 = vsyncadd [#allocation6], 0
          %s216 = sshll.u32 %s4, 4
          %s217 = int_to_ptr.hbm [resolvable:$true] %s216
          %s218 = sshll.u32 [#allocation5], 4
          %s219 = int_to_ptr.vmem [resolvable:$true] %s218
          %224 = dma.hbm_to_vmem [thread:$0]  %s217, 4096, %s219, [#allocation6], 256, 256, 16
        $region24: #{attflat.1} parent=11 // pred_fallthru
          _
        // Predicated region
        $region25: #{attflat.1} parent=11 // pred_check
          %p225 = pneg %p153
        $region26: #{attflat.1} parent=11 // pred_check_branch
          %227 = sbr.rel (%p225) target = $region28
        $region27: #{attflat.1} parent=11 // pred_region
          _
        $region28: #{attflat.1} parent=11 // pred_fallthru
          _
      $region12: #{attflat.1} parent=5 // pred_fallthru
        _
      %p228 = scmp.lt.s32.totalorder %s17, 2
      // Predicated region
      $region29: #{attflat.1} parent=5 // pred_check
        %p229 = pneg %p228
      $region30: #{attflat.1} parent=5 // pred_check_branch
        %231 = sbr.rel (%p229) target = $region32
      $region31: #{attflat.1} parent=5 // pred_region
        // Predicated region
        $region33: #{attflat.1} parent=31 // pred_check
          %p232 = pneg %p37
        $region34: #{attflat.1} parent=31 // pred_check_branch
          %234 = sbr.rel (%p232) target = $region36
        $region35: #{attflat.1} parent=31 // pred_region
          %s235 = smul.u32 8, %s17
          %p236 = scmp.lt.s32.totalorder %s235, 15
          %s237 = scalar_select %p236, %s235, 15
          %s238 = smul.addr %s237, 8
          %s239 = scalar_lea.vmem %s0, %s238
          %s240 = smul.u32 8, %s17
        $region36: #{attflat.1} parent=31 // pred_fallthru
          _
        // Predicated region
        $region37: #{attflat.1} parent=31 // pred_check
          %p241 = pneg %p63
        $region38: #{attflat.1} parent=31 // pred_check_branch
          %243 = sbr.rel (%p241) target = $region40
        $region39: #{attflat.1} parent=31 // pred_region
          %s244 = smul.u32 8, %s17
          %p245 = scmp.lt.s32.totalorder %s244, 15
          %s246 = scalar_select %p245, %s244, 15
          %s247 = smul.addr %s246, 8
          %s248 = scalar_lea.vmem %s1, %s247
          %s249 = smul.u32 8, %s17
        $region40: #{attflat.1} parent=31 // pred_fallthru
          _
      $region32: #{attflat.1} parent=5 // pred_fallthru
        _
      %p250 = scmp.le.s32.totalorder 1, %s17
      %p251 = scmp.lt.s32.totalorder %s17, 3
      %p252 = pnand %p250, %p251
      %p253 = pneg %p252
      // Predicated region
      $region41: #{attflat.1} parent=5 // pred_check
        _
      $region42: #{attflat.1} parent=5 // pred_check_branch
        %255 = sbr.rel (%p252) target = $region44
      $region43: #{attflat.1} parent=5 // pred_region
        %s256 = ssub.s32 %s17, 1
        // Predicated region
        $region45: #{attflat.1} parent=43 // pred_check
          %p257 = pneg %p90
        $region46: #{attflat.1} parent=43 // pred_check_branch
          %259 = sbr.rel (%p257) target = $region48
        $region47: #{attflat.1} parent=43 // pred_region
          %261 = dma.done [#allocation3], 2048
        $region48: #{attflat.1} parent=43 // pred_fallthru
          _
        // Predicated region
        $region49: #{attflat.1} parent=43 // pred_check
          %p262 = pneg %p132
        $region50: #{attflat.1} parent=43 // pred_check_branch
          %264 = sbr.rel (%p262) target = $region52
        $region51: #{attflat.1} parent=43 // pred_region
          %266 = dma.done [#allocation6], 4096
        $region52: #{attflat.1} parent=43 // pred_fallthru
          _
        %s267 = smul.u32 8, %s22
        %p268 = scmp.lt.s32.totalorder %s267, 15
        %s269 = scalar_select %p268, %s267, 15
        %s270 = smul.addr %s269, 8
        %s271 = scalar_lea.vmem %s0, %s270
        %p272 = pneg %p43
        %p273 = pneg %p40
        %s274 = smul.u32 8, %s22
        %p275 = scmp.lt.s32.totalorder %s274, 15
        %s276 = scalar_select %p275, %s274, 15
        %s277 = smul.addr %s276, 8
        %s278 = scalar_lea.vmem %s1, %s277
        %p279 = pneg %p69
        %p280 = pneg %p66
        %p281 = pneg %p90
        %p282 = pneg %p87
        %p283 = pneg %p111
        %p284 = pneg %p108
        %p285 = pneg %p132
        %p286 = pneg %p129
        %p287 = pneg %p153
        %p288 = pneg %p150
        %p289 = pneg %p179
        %p290 = pneg %p176
        %s291 = sand.u32 %s166, 1
        %s292 = scalar_lea.sflag [#allocation4], %s291
        %s293 = sand.u32 %s166, 1
        %s294 = smul.addr %s293, 16
        %s295 = scalar_lea.vmem [#allocation7], %s294
        %s296 = smul.u32 8, %s22
        %p297 = scmp.lt.s32.totalorder %s296, 15
        %s298 = scalar_select %p297, %s296, 15
        %s299 = smul.addr %s298, 8
        %s300 = scalar_lea.vmem %s0, %s299
        %s301 = smul.u32 8, %s22
        %s302 = smul.u32 8, %s22
        %p303 = scmp.lt.s32.totalorder %s302, 15
        %s304 = scalar_select %p303, %s302, 15
        %s305 = smul.addr %s304, 8
        %s306 = scalar_lea.vmem %s1, %s305
        %s307 = smul.u32 8, %s22
        %v308 = vld [vmem:[%s300] sm:$0xff]
        %v309 = vld [vmem:[%s300 + $0x8] sm:$0xff]
        %v310 = vld [vmem:[%s300 + $0x10] sm:$0xff]
        %v311 = vld [vmem:[%s300 + $0x18] sm:$0xff]
        %v312 = vld [vmem:[%s300 + $0x20] sm:$0xff]
        %v313 = vld [vmem:[%s300 + $0x28] sm:$0xff]
        %v314 = vld [vmem:[%s300 + $0x30] sm:$0xff]
        %v315 = vld [vmem:[%s300 + $0x38] sm:$0xff]
        %v316 = vld [vmem:[#allocation2] sm:$0xff]
        %v317 = vld [vmem:[#allocation2 + $0x8] sm:$0xff]
        %v318 = vld [vmem:[#allocation2 + $0x10] sm:$0xff]
        %v319 = vld [vmem:[#allocation2 + $0x18] sm:$0xff]
        %v320 = vld [vmem:[#allocation2 + $0x20] sm:$0xff]
        %v321 = vld [vmem:[#allocation2 + $0x28] sm:$0xff]
        %v322 = vld [vmem:[#allocation2 + $0x30] sm:$0xff]
        %v323 = vld [vmem:[#allocation2 + $0x38] sm:$0xff]
        %v324 = vld [vmem:[#allocation2 + $0x40] sm:$0xff]
        %v325 = vld [vmem:[#allocation2 + $0x48] sm:$0xff]
        %v326 = vld [vmem:[#allocation2 + $0x50] sm:$0xff]
        %v327 = vld [vmem:[#allocation2 + $0x58] sm:$0xff]
        %v328 = vld [vmem:[#allocation2 + $0x60] sm:$0xff]
        %v329 = vld [vmem:[#allocation2 + $0x68] sm:$0xff]
        %v330 = vld [vmem:[#allocation2 + $0x70] sm:$0xff]
        %v331 = vld [vmem:[#allocation2 + $0x78] sm:$0xff]
        %v332 = vld [vmem:[%s3] sm:$0x1]
        %v334 = vperm.slane %v332, 0
        %336 = vmatpush.msra.mxu0 %v331
        %337 = vmatpush.msra.mxu0 %v330
        %338 = vmatpush.msra.mxu0 %v329
        %339 = vmatpush.msra.mxu0 %v328
        %340 = vmatpush.msra.mxu0 %v327
        %341 = vmatpush.msra.mxu0 %v326
        %342 = vmatpush.msra.mxu0 %v325
        %343 = vmatpush.msra.mxu0 %v324
        %344 = vmatpush.msra.mxu0 %v323
        %345 = vmatpush.msra.mxu0 %v322
        %346 = vmatpush.msra.mxu0 %v321
        %347 = vmatpush.msra.mxu0 %v320
        %348 = vmatpush.msra.mxu0 %v319
        %349 = vmatpush.msra.mxu0 %v318
        %350 = vmatpush.msra.mxu0 %v317
        %351 = vmatpush.msra.mxu0 %v316
        %352 = vmatmul.f32.gmra.mxu0 %v308
        %v353 = vpop.f32.mrf.mxu0
        %v354 = vadd.f32 %v334, %v353
        %355 = vmatmul.f32.gmra.mxu0 %v309
        %v356 = vpop.f32.mrf.mxu0
        %v357 = vadd.f32 %v334, %v356
        %358 = vmatmul.f32.gmra.mxu0 %v310
        %v359 = vpop.f32.mrf.mxu0
        %v360 = vadd.f32 %v334, %v359
        %361 = vmatmul.f32.gmra.mxu0 %v311
        %v362 = vpop.f32.mrf.mxu0
        %v363 = vadd.f32 %v334, %v362
        %364 = vmatmul.f32.gmra.mxu0 %v312
        %v365 = vpop.f32.mrf.mxu0
        %v366 = vadd.f32 %v334, %v365
        %367 = vmatmul.f32.gmra.mxu0 %v313
        %v368 = vpop.f32.mrf.mxu0
        %v369 = vadd.f32 %v334, %v368
        %370 = vmatmul.f32.gmra.mxu0 %v314
        %v371 = vpop.f32.mrf.mxu0
        %v372 = vadd.f32 %v334, %v371
        %373 = vmatmul.f32.gmra.mxu0 %v315
        %v374 = vpop.f32.mrf.mxu0
        %v375 = vadd.f32 %v334, %v374
        %376 = vdwg.mxu0
        %v377 = vmax.f32 %v354, 0.0
        %v378 = vmax.f32 %v357, 0.0
        %v379 = vmax.f32 %v360, 0.0
        %v380 = vmax.f32 %v363, 0.0
        %v381 = vmax.f32 %v366, 0.0
        %v382 = vmax.f32 %v369, 0.0
        %v383 = vmax.f32 %v372, 0.0
        %v384 = vmax.f32 %v375, 0.0
        %v385 = vld [vmem:[%s306] sm:$0xff]
        %v386 = vld [vmem:[%s306 + $0x8] sm:$0xff]
        %v387 = vld [vmem:[%s306 + $0x10] sm:$0xff]
        %v388 = vld [vmem:[%s306 + $0x18] sm:$0xff]
        %v389 = vld [vmem:[%s306 + $0x20] sm:$0xff]
        %v390 = vld [vmem:[%s306 + $0x28] sm:$0xff]
        %v391 = vld [vmem:[%s306 + $0x30] sm:$0xff]
        %v392 = vld [vmem:[%s306 + $0x38] sm:$0xff]
        %394 = vset.pattern.permute.xlu0 0
        %395 = vperm.xlu0 %394, %v385
        %v396 = vpop.permute.xlu0 %395
        %399 = vset.pattern.permute.xlu0 0
        %400 = vperm.xlu0 %399, %v386
        %v401 = vpop.permute.xlu0 %400
        %404 = vset.pattern.permute.xlu0 0
        %405 = vperm.xlu0 %404, %v387
        %v406 = vpop.permute.xlu0 %405
        %409 = vset.pattern.permute.xlu0 0
        %410 = vperm.xlu0 %409, %v388
        %v411 = vpop.permute.xlu0 %410
        %414 = vset.pattern.permute.xlu0 0
        %415 = vperm.xlu0 %414, %v389
        %v416 = vpop.permute.xlu0 %415
        %419 = vset.pattern.permute.xlu0 0
        %420 = vperm.xlu0 %419, %v390
        %v421 = vpop.permute.xlu0 %420
        %424 = vset.pattern.permute.xlu0 0
        %425 = vperm.xlu0 %424, %v391
        %v426 = vpop.permute.xlu0 %425
        %429 = vset.pattern.permute.xlu0 0
        %430 = vperm.xlu0 %429, %v392
        %v431 = vpop.permute.xlu0 %430
        %v433 = vmul.f32 %v377, %v396
        %v434 = vmul.f32 %v378, %v401
        %v435 = vmul.f32 %v379, %v406
        %v436 = vmul.f32 %v380, %v411
        %v437 = vmul.f32 %v381, %v416
        %v438 = vmul.f32 %v382, %v421
        %v439 = vmul.f32 %v383, %v426
        %v440 = vmul.f32 %v384, %v431
        %v441 = vsub.f32 %v385, 1.0
        %v442 = vsub.f32 %v386, 1.0
        %v443 = vsub.f32 %v387, 1.0
        %v444 = vsub.f32 %v388, 1.0
        %v445 = vsub.f32 %v389, 1.0
        %v446 = vsub.f32 %v390, 1.0
        %v447 = vsub.f32 %v391, 1.0
        %v448 = vsub.f32 %v392, 1.0
        %v449 = vmul.f32 %v441, 1e+09
        %v450 = vmul.f32 %v442, 1e+09
        %v451 = vmul.f32 %v443, 1e+09
        %v452 = vmul.f32 %v444, 1e+09
        %v453 = vmul.f32 %v445, 1e+09
        %v454 = vmul.f32 %v446, 1e+09
        %v455 = vmul.f32 %v447, 1e+09
        %v456 = vmul.f32 %v448, 1e+09
        %458 = vset.pattern.permute.xlu0 0
        %459 = vperm.xlu0 %458, %v449
        %v460 = vpop.permute.xlu0 %459
        %463 = vset.pattern.permute.xlu0 0
        %464 = vperm.xlu0 %463, %v450
        %v465 = vpop.permute.xlu0 %464
        %468 = vset.pattern.permute.xlu0 0
        %469 = vperm.xlu0 %468, %v451
        %v470 = vpop.permute.xlu0 %469
        %473 = vset.pattern.permute.xlu0 0
        %474 = vperm.xlu0 %473, %v452
        %v475 = vpop.permute.xlu0 %474
        %478 = vset.pattern.permute.xlu0 0
        %479 = vperm.xlu0 %478, %v453
        %v480 = vpop.permute.xlu0 %479
        %483 = vset.pattern.permute.xlu0 0
        %484 = vperm.xlu0 %483, %v454
        %v485 = vpop.permute.xlu0 %484
        %488 = vset.pattern.permute.xlu0 0
        %489 = vperm.xlu0 %488, %v455
        %v490 = vpop.permute.xlu0 %489
        %493 = vset.pattern.permute.xlu0 0
        %494 = vperm.xlu0 %493, %v456
        %v495 = vpop.permute.xlu0 %494
        %v497 = vadd.f32 %v433, %v460
        %v498 = vadd.f32 %v434, %v465
        %v499 = vadd.f32 %v435, %v470
        %v500 = vadd.f32 %v436, %v475
        %v501 = vadd.f32 %v437, %v480
        %v502 = vadd.f32 %v438, %v485
        %v503 = vadd.f32 %v439, %v490
        %v504 = vadd.f32 %v440, %v495
        %505 = vmax.xlane.f32.xlu0 %v497
        %v506 = vpop.xlane.xlu0 %505
        %507 = vmax.xlane.f32.xlu0 %v498
        %v508 = vpop.xlane.xlu0 %507
        %509 = vmax.xlane.f32.xlu0 %v499
        %v510 = vpop.xlane.xlu0 %509
        %511 = vmax.xlane.f32.xlu0 %v500
        %v512 = vpop.xlane.xlu0 %511
        %513 = vmax.xlane.f32.xlu0 %v501
        %v514 = vpop.xlane.xlu0 %513
        %515 = vmax.xlane.f32.xlu0 %v502
        %v516 = vpop.xlane.xlu0 %515
        %517 = vmax.xlane.f32.xlu0 %v503
        %v518 = vpop.xlane.xlu0 %517
        %519 = vmax.xlane.f32.xlu0 %v504
        %v520 = vpop.xlane.xlu0 %519
        %v521 = vsub.f32 %v497, %v506
        %v522 = vsub.f32 %v498, %v508
        %v523 = vsub.f32 %v499, %v510
        %v524 = vsub.f32 %v500, %v512
        %v525 = vsub.f32 %v501, %v514
        %v526 = vsub.f32 %v502, %v516
        %v527 = vsub.f32 %v503, %v518
        %v528 = vsub.f32 %v504, %v520
        %v529 = vmul.f32 %v521, 1.442695
        %v530 = vpow.pop %v529
        %v531 = vmul.f32 %v522, 1.442695
        %v532 = vpow.pop %v531
        %v533 = vmul.f32 %v523, 1.442695
        %v534 = vpow.pop %v533
        %v535 = vmul.f32 %v524, 1.442695
        %v536 = vpow.pop %v535
        %v537 = vmul.f32 %v525, 1.442695
        %v538 = vpow.pop %v537
        %v539 = vmul.f32 %v526, 1.442695
        %v540 = vpow.pop %v539
        %v541 = vmul.f32 %v527, 1.442695
        %v542 = vpow.pop %v541
        %v543 = vmul.f32 %v528, 1.442695
        %v544 = vpow.pop %v543
        %545 = vadd.xlane.f32.xlu0 %v530
        %v546 = vpop.xlane.xlu0 %545
        %547 = vadd.xlane.f32.xlu0 %v532
        %v548 = vpop.xlane.xlu0 %547
        %549 = vadd.xlane.f32.xlu0 %v534
        %v550 = vpop.xlane.xlu0 %549
        %551 = vadd.xlane.f32.xlu0 %v536
        %v552 = vpop.xlane.xlu0 %551
        %553 = vadd.xlane.f32.xlu0 %v538
        %v554 = vpop.xlane.xlu0 %553
        %555 = vadd.xlane.f32.xlu0 %v540
        %v556 = vpop.xlane.xlu0 %555
        %557 = vadd.xlane.f32.xlu0 %v542
        %v558 = vpop.xlane.xlu0 %557
        %559 = vadd.xlane.f32.xlu0 %v544
        %v560 = vpop.xlane.xlu0 %559
        %v561 = vrcp.pop %v546
        %v562 = vrcp.pop %v548
        %v563 = vrcp.pop %v550
        %v564 = vrcp.pop %v552
        %v565 = vrcp.pop %v554
        %v566 = vrcp.pop %v556
        %v567 = vrcp.pop %v558
        %v568 = vrcp.pop %v560
        %v569 = vmul.f32 %v530, %v561
        %v570 = vmul.f32 %v532, %v562
        %v571 = vmul.f32 %v534, %v563
        %v572 = vmul.f32 %v536, %v564
        %v573 = vmul.f32 %v538, %v565
        %v574 = vmul.f32 %v540, %v566
        %v575 = vmul.f32 %v542, %v567
        %v576 = vmul.f32 %v544, %v568
        %v577 = vmul.f32 %v569, %v308
        %v578 = vmul.f32 %v570, %v309
        %v579 = vmul.f32 %v571, %v310
        %v580 = vmul.f32 %v572, %v311
        %v581 = vmul.f32 %v573, %v312
        %v582 = vmul.f32 %v574, %v313
        %v583 = vmul.f32 %v575, %v314
        %v584 = vmul.f32 %v576, %v315
        %v585 = vrot.slane %v577, 4
        %v586 = vadd.f32 %v577, %v585
        %v587 = vrot.slane %v586, 2
        %v588 = vadd.f32 %v586, %v587
        %v589 = vrot.slane %v588, 1
        %v590 = vadd.f32 %v588, %v589
        %v591 = vrot.slane %v578, 4
        %v592 = vadd.f32 %v578, %v591
        %v593 = vrot.slane %v592, 2
        %v594 = vadd.f32 %v592, %v593
        %v595 = vrot.slane %v594, 1
        %v596 = vadd.f32 %v594, %v595
        %v597 = vrot.slane %v579, 4
        %v598 = vadd.f32 %v579, %v597
        %v599 = vrot.slane %v598, 2
        %v600 = vadd.f32 %v598, %v599
        %v601 = vrot.slane %v600, 1
        %v602 = vadd.f32 %v600, %v601
        %v603 = vrot.slane %v580, 4
        %v604 = vadd.f32 %v580, %v603
        %v605 = vrot.slane %v604, 2
        %v606 = vadd.f32 %v604, %v605
        %v607 = vrot.slane %v606, 1
        %v608 = vadd.f32 %v606, %v607
        %v609 = vrot.slane %v581, 4
        %v610 = vadd.f32 %v581, %v609
        %v611 = vrot.slane %v610, 2
        %v612 = vadd.f32 %v610, %v611
        %v613 = vrot.slane %v612, 1
        %v614 = vadd.f32 %v612, %v613
        %v615 = vrot.slane %v582, 4
        %v616 = vadd.f32 %v582, %v615
        %v617 = vrot.slane %v616, 2
        %v618 = vadd.f32 %v616, %v617
        %v619 = vrot.slane %v618, 1
        %v620 = vadd.f32 %v618, %v619
        %v621 = vrot.slane %v583, 4
        %v622 = vadd.f32 %v583, %v621
        %v623 = vrot.slane %v622, 2
        %v624 = vadd.f32 %v622, %v623
        %v625 = vrot.slane %v624, 1
        %v626 = vadd.f32 %v624, %v625
        %v627 = vrot.slane %v584, 4
        %v628 = vadd.f32 %v584, %v627
        %v629 = vrot.slane %v628, 2
        %v630 = vadd.f32 %v628, %v629
        %v631 = vrot.slane %v630, 1
        %v632 = vadd.f32 %v630, %v631
        %v633 = vld [vmem:[#allocation5] sm:$0xff]
        %v634 = vld [vmem:[#allocation5 + $0x8] sm:$0xff]
        %v635 = vld [vmem:[#allocation5 + $0x10] sm:$0xff]
        %v636 = vld [vmem:[#allocation5 + $0x18] sm:$0xff]
        %v637 = vld [vmem:[#allocation5 + $0x20] sm:$0xff]
        %v638 = vld [vmem:[#allocation5 + $0x28] sm:$0xff]
        %v639 = vld [vmem:[#allocation5 + $0x30] sm:$0xff]
        %v640 = vld [vmem:[#allocation5 + $0x38] sm:$0xff]
        %v641 = vld [vmem:[#allocation5 + $0x40] sm:$0xff]
        %v642 = vld [vmem:[#allocation5 + $0x48] sm:$0xff]
        %v643 = vld [vmem:[#allocation5 + $0x50] sm:$0xff]
        %v644 = vld [vmem:[#allocation5 + $0x58] sm:$0xff]
        %v645 = vld [vmem:[#allocation5 + $0x60] sm:$0xff]
        %v646 = vld [vmem:[#allocation5 + $0x68] sm:$0xff]
        %v647 = vld [vmem:[#allocation5 + $0x70] sm:$0xff]
        %v648 = vld [vmem:[#allocation5 + $0x78] sm:$0xff]
        %v649 = vld [vmem:[#allocation5 + $0x80] sm:$0xff]
        %v650 = vld [vmem:[#allocation5 + $0x88] sm:$0xff]
        %v651 = vld [vmem:[#allocation5 + $0x90] sm:$0xff]
        %v652 = vld [vmem:[#allocation5 + $0x98] sm:$0xff]
        %v653 = vld [vmem:[#allocation5 + $0xa0] sm:$0xff]
        %v654 = vld [vmem:[#allocation5 + $0xa8] sm:$0xff]
        %v655 = vld [vmem:[#allocation5 + $0xb0] sm:$0xff]
        %v656 = vld [vmem:[#allocation5 + $0xb8] sm:$0xff]
        %v657 = vld [vmem:[#allocation5 + $0xc0] sm:$0xff]
        %v658 = vld [vmem:[#allocation5 + $0xc8] sm:$0xff]
        %v659 = vld [vmem:[#allocation5 + $0xd0] sm:$0xff]
        %v660 = vld [vmem:[#allocation5 + $0xd8] sm:$0xff]
        %v661 = vld [vmem:[#allocation5 + $0xe0] sm:$0xff]
        %v662 = vld [vmem:[#allocation5 + $0xe8] sm:$0xff]
        %v663 = vld [vmem:[#allocation5 + $0xf0] sm:$0xff]
        %v664 = vld [vmem:[#allocation5 + $0xf8] sm:$0xff]
        %v665 = vld [vmem:[%s5] sm:$0x3]
        %v667 = vperm.slane %v665, 0
        %v668 = vperm.slane %v665, 1
        %vm679 = vcmask 1041409
        %v680 = vsel %vm679, %v596, %v590
        %vm681 = vcmask 1042434
        %v682 = vsel %vm681, %v602, %v680
        %vm683 = vcmask 1043459
        %v684 = vsel %vm683, %v608, %v682
        %vm685 = vcmask 1044484
        %v686 = vsel %vm685, %v614, %v684
        %vm687 = vcmask 1045509
        %v688 = vsel %vm687, %v620, %v686
        %vm689 = vcmask 1046534
        %v690 = vsel %vm689, %v626, %v688
        %vm691 = vcmask 1047559
        %v692 = vsel %vm691, %v632, %v690
        %694 = vmatpush.msra.mxu0 %v663
        %695 = vmatpush.msra.mxu0 %v661
        %696 = vmatpush.msra.mxu0 %v659
        %697 = vmatpush.msra.mxu0 %v657
        %698 = vmatpush.msra.mxu0 %v655
        %699 = vmatpush.msra.mxu0 %v653
        %700 = vmatpush.msra.mxu0 %v651
        %701 = vmatpush.msra.mxu0 %v649
        %702 = vmatpush.msra.mxu0 %v647
        %703 = vmatpush.msra.mxu0 %v645
        %704 = vmatpush.msra.mxu0 %v643
        %705 = vmatpush.msra.mxu0 %v641
        %706 = vmatpush.msra.mxu0 %v639
        %707 = vmatpush.msra.mxu0 %v637
        %708 = vmatpush.msra.mxu0 %v635
        %709 = vmatpush.msra.mxu0 %v633
        %710 = vmatmul.f32.gmra.mxu0 %v692
        %v711 = vpop.f32.mrf.mxu0
        %v712 = vadd.f32 %v667, %v711
        %713 = vdwg.mxu0
        %714 = vmatpush.msra.mxu0 %v664
        %715 = vmatpush.msra.mxu0 %v662
        %716 = vmatpush.msra.mxu0 %v660
        %717 = vmatpush.msra.mxu0 %v658
        %718 = vmatpush.msra.mxu0 %v656
        %719 = vmatpush.msra.mxu0 %v654
        %720 = vmatpush.msra.mxu0 %v652
        %721 = vmatpush.msra.mxu0 %v650
        %722 = vmatpush.msra.mxu0 %v648
        %723 = vmatpush.msra.mxu0 %v646
        %724 = vmatpush.msra.mxu0 %v644
        %725 = vmatpush.msra.mxu0 %v642
        %726 = vmatpush.msra.mxu0 %v640
        %727 = vmatpush.msra.mxu0 %v638
        %728 = vmatpush.msra.mxu0 %v636
        %729 = vmatpush.msra.mxu0 %v634
        %730 = vmatmul.f32.gmra.mxu0 %v692
        %v731 = vpop.f32.mrf.mxu0
        %v732 = vadd.f32 %v668, %v731
        %733 = vdwg.mxu0
        %734 = vst [vmem:[%s295] sm:$0xff] %v712
        %735 = vst [vmem:[%s295 + $0x8] sm:$0xff] %v732
        %s736 = sand.u32 %s166, 1
        %s737 = scalar_lea.sflag [#allocation4], %s736
        %s738 = sand.u32 %s166, 1
        %s739 = smul.addr %s738, 16
        %s740 = scalar_lea.vmem [#allocation7], %s739
        // Predicated region
        $region53: #{attflat.1} parent=43 // pred_check
          %p741 = pneg %p176
        $region54: #{attflat.1} parent=43 // pred_check_branch
          %743 = sbr.rel (%p741) target = $region56
        $region55: #{attflat.1} parent=43 // pred_region
          %745 = vsyncadd %s737, 0
          %s746 = smul.addr %s22, 2
          %s747 = smul.addr %s746, 8
          %s748 = scalar_lea.hbm %s6, %s747
          %s750 = sshll.u32 %s740, 4
          %s751 = int_to_ptr.vmem [resolvable:$true] %s750
          %s752 = sshll.u32 %s748, 4
          %s753 = int_to_ptr.hbm [resolvable:$true] %s752
          %755 = dma.vmem_to_hbm [thread:$0]  %s751, 256, %s753, %s737
        $region56: #{attflat.1} parent=43 // pred_fallthru
          _
      $region44: #{attflat.1} parent=5 // pred_fallthru
        _
      %p756 = scmp.le.s32.totalorder 2, %s17
      // Predicated region
      $region57: #{attflat.1} parent=5 // pred_check
        %p757 = pneg %p756
      $region58: #{attflat.1} parent=5 // pred_check_branch
        %759 = sbr.rel (%p757) target = $region60
      $region59: #{attflat.1} parent=5 // pred_region
        %s760 = ssub.s32 %s17, 2
        // Predicated region
        $region61: #{attflat.1} parent=59 // pred_check
          %p761 = pneg %p182
        $region62: #{attflat.1} parent=59 // pred_check_branch
          %763 = sbr.rel (%p761) target = $region64
        $region63: #{attflat.1} parent=59 // pred_region
          %s764 = sand.u32 %s167, 1
          %s765 = scalar_lea.sflag [#allocation4], %s764
          %s766 = sand.u32 %s167, 1
          %s767 = smul.addr %s766, 16
          %s768 = scalar_lea.vmem [#allocation7], %s767
          %770 = dma.done %s765, 256
        $region64: #{attflat.1} parent=59 // pred_fallthru
          _
      $region60: #{attflat.1} parent=5 // pred_fallthru
        _
    $region6: #{attflat.1} parent=1 // loop_footer
      %s21 = sadd.s32 1, %s17
    $region7: #{attflat.1} parent=1 // loop_footer_branch
      %16 = sbr.rel target = $region3
    $region8: #{attflat.1} parent=1 // loop_exit
      _
    %771 = vsyncpa [#allocation3], 1
    %s772 = scalar_lea.sflag [#allocation3], 1
    %773 = vsyncpa %s772, 1
    %774 = vsyncpa [#allocation6], 1
    %775 = vsyncpa [#allocation4], 1
    %s776 = scalar_lea.sflag [#allocation4], 1
    %777 = vsyncpa %s776, 1

</llo_original>
